<compile_context>
chip_gen: v7x
topology: tpu7x:2x2x1
jax: 0.10.0
libtpu: 0.0.40
codegen_flags: <defaults>
</compile_context>

<pallas_src>
import functools

import jax
import jax.numpy as jnp
from jax.experimental import pallas as pl
from jax.experimental.pallas import tpu as pltpu


def _default_tanh_dtype():
    """bf16 tanh on v6e/v7x (bf16 EUP); f32 elsewhere (v5e has no bf16 EUP)."""
    kind = jax.devices()[0].device_kind.lower()
    if "v6" in kind or "v7" in kind:
        return jnp.bfloat16
    return jnp.float32


def prepare_seq2seq_params(Wb, Wc, Wa_T, fc_w, fc_b):
    """One-time (parameter-load time) re-layout of the PyTorch nn.Linear
    weights so the per-call path never re-emits XLA transposes.
    Wb [D,D], Wc [D,E2], Wa_T [1,D], fc_w [D,2*enc_hid], fc_b [D]."""
    D = fc_w.shape[0]
    return dict(
        Wb_T=jnp.asarray(Wb).T,
        Wc_T=jnp.asarray(Wc).T,
        Wa=jnp.asarray(Wa_T).reshape(1, -1),
        fc_wT=jnp.asarray(fc_w).T,
        fc_b=jnp.asarray(fc_b).reshape(1, D),
    )


# ---------------------------------------------------------------------------
# Kernel 1: fused one-time precompute (encoder projection + init hidden)
# ---------------------------------------------------------------------------
def _precompute_kernel(enc2d_ref, wc_ref, cat_ref, wf_ref, bf_ref,
                       wh_ref, encs_ref, h0_ref):
    # enc2d_ref: [B*S, E2] f32   encoder outputs, batch-major, flattened
    # wc_ref   : [E2, D]   f32   Wc^T
    # cat_ref  : [B, 2*enc_hid]  cat(enc_hidden[-2], enc_hidden[-1])
    # wf_ref   : [2*enc_hid, D]  fc.weight^T
    # bf_ref   : [1, D]          fc.bias
    # wh_ref   : [B*S, D]  storage dtype  (Wc @ enc, step-invariant, hoisted)
    # encs_ref : [B*S, E2] storage dtype
    # h0_ref   : [B, D]    f32            decoder initial hidden state
    enc = enc2d_ref[...]
    wh = jnp.dot(enc, wc_ref[...], preferred_element_type=jnp.float32)
    wh_ref[...] = wh.astype(wh_ref.dtype)
    encs_ref[...] = enc.astype(encs_ref.dtype)
    z = jnp.dot(cat_ref[...], wf_ref[...], preferred_element_type=jnp.float32)
    h0_ref[...] = jnp.tanh(z + bf_ref[...])


def precompute_encoder_tensors(enc_bse, enc_hidden, params,
                               storage_dtype=jnp.bfloat16):
    """enc_bse: [B, S, E2] encoder outputs (batch-major); enc_hidden: [L,B,H].
    Returns (enc_s [B,S,E2], w_h [B,S,D], h0 [B,D]).  Called once per source
    sequence; amortized over every decode step."""
    B, S, E2 = enc_bse.shape
    D = params["Wc_T"].shape[1]
    cat = jnp.concatenate([enc_hidden[-2], enc_hidden[-1]], axis=-1)  # [B, 2H]
    enc2d = enc_bse.reshape(B * S, E2)            # contiguous reshape: free
    vmem = pl.BlockSpec(memory_space=pltpu.MemorySpace.VMEM)
    wh2d, encs2d, h0 = pl.pallas_call(
        _precompute_kernel,
        out_shape=(jax.ShapeDtypeStruct((B * S, D), storage_dtype),
                   jax.ShapeDtypeStruct((B * S, E2), storage_dtype),
                   jax.ShapeDtypeStruct((B, D), jnp.float32)),
        in_specs=[vmem] * 5,
        out_specs=(vmem, vmem, vmem),
    )(enc2d, params["Wc_T"], cat, params["fc_wT"], params["fc_b"])
    return encs2d.reshape(B, S, E2), wh2d.reshape(B, S, D), h0


# ---------------------------------------------------------------------------
# Kernel 2: Bahdanau attention, all T decoder queries in a single invocation
# ---------------------------------------------------------------------------
def _bahdanau_kernel(dec_ref, enc_ref, wh_ref, wb_ref, wa_ref, ctx_ref,
                     *, T, B, tanh_dtype, use_mxu_context):
    # dec_ref: [T*B, D]   T decoder query states folded into the batch axis
    # enc_ref: [B, S, E2] wh_ref: [B, S, D]   (storage dtype, shared across T)
    # wb_ref : [D, D]  Wb^T      wa_ref: [1, D]  Wa row
    # ctx_ref: [T, B, E2]
    w_s = jnp.dot(dec_ref[...], wb_ref[...],
                  preferred_element_type=jnp.float32)             # [T*B, D]
    D = w_s.shape[-1]
    w_s = w_s.reshape(T, B, 1, D)                                 # [T, B, 1, D]
    wh = wh_ref[...].astype(jnp.float32)                          # [B, S, D]

    pre = w_s + wh[None]                                          # [T, B, S, D]
    e = jnp.tanh(pre.astype(tanh_dtype)).astype(jnp.float32)

    # Wa projection (N=1): VPU multiply + lane reduce over D (no MXU waste).
    score = jnp.sum(e * wa_ref[...][None, None, :, :], axis=-1)   # [T, B, S]

    # Softmax over the source axis; S sits on the 128-lane axis so both
    # reductions are lane reductions (matches PyTorch's dim-0 softmax).
    m = jnp.max(score, axis=-1, keepdims=True)
    p = jnp.exp(score - m)
    denom = jnp.sum(p, axis=-1, keepdims=True)
    inv = pl.reciprocal(denom, approx=True)          # EUP slot
    inv = inv * (2.0 - denom * inv)                  # one Newton step (VALU)
    attn = p * inv                                   # [T, B, S]

    enc = enc_ref[...].astype(jnp.float32)           # [B, S, E2]
    if use_mxu_context:
        # Large S*E2: batched MXU contraction over S (batch dim leading).
        ctx = jnp.einsum("bts,bse->bte", jnp.swapaxes(attn, 0, 1), enc,
                         preferred_element_type=jnp.float32)
        ctx = jnp.swapaxes(ctx, 0, 1)                # [T, B, E2]
    else:
        # Small shapes: broadcast-multiply + sublane reduce.
        ctx = jnp.sum(attn[..., None] * enc[None], axis=2)        # [T, B, E2]
    ctx_ref[...] = ctx.astype(ctx_ref.dtype)


def bahdanau_attention(dec_hiddens, enc_s, w_h, params, *, tanh_dtype=None):
    """dec_hiddens: [T, B, D] -- T independent decoder query states (T = 1
    reproduces a single `attention(hidden, enc_outputs)` call of the module).
    enc_s [B,S,E2] and w_h [B,S,D] come from precompute_encoder_tensors.
    Returns contexts [T, B, E2] in f32."""
    T, B, D = dec_hiddens.shape
    _, S, E2 = enc_s.shape
    if tanh_dtype is None:
        tanh_dtype = _default_tanh_dtype()
    use_mxu_context = (S >= 128 and E2 >= 128)

    flops = (2 * T * B * D * D + 4 * T * B * S * D + 6 * T * B * S
             + 2 * T * B * S * E2)
    transcendentals = T * B * S * D + T * B * S + T * B
    itemsize = jnp.dtype(enc_s.dtype).itemsize
    bytes_accessed = (4 * T * B * D + itemsize * B * S * (E2 + D)
                      + 4 * D * D + 4 * D + 4 * T * B * E2)

    kernel = functools.partial(_bahdanau_kernel, T=T, B=B,
                               tanh_dtype=tanh_dtype,
                               use_mxu_context=use_mxu_context)
    vmem = pl.BlockSpec(memory_space=pltpu.MemorySpace.VMEM)
    return pl.pallas_call(
        kernel,
        out_shape=jax.ShapeDtypeStruct((T, B, E2), jnp.float32),
        in_specs=[vmem] * 5,
        out_specs=vmem,
        cost_estimate=pl.CostEstimate(flops=flops,
                                      transcendentals=transcendentals,
                                      bytes_accessed=bytes_accessed),
    )(dec_hiddens.reshape(T * B, D), enc_s, w_h,
      params["Wb_T"], params["Wa"])


# ---------------------------------------------------------------------------
# Pure-JAX reference (mirrors the PyTorch math, seq-major layout)
# ---------------------------------------------------------------------------
def reference_attention(dec_prev_hidden, enc_outputs_sbe, Wb, Wc, Wa_T):
    """dec_prev_hidden: [1, B, D]; enc_outputs_sbe: [S, B, E2]."""
    S = enc_outputs_sbe.shape[0]
    s_t_1 = jnp.broadcast_to(dec_prev_hidden,
                             (S,) + dec_prev_hidden.shape[1:])
    weighted_s = s_t_1 @ Wb.T
    weighted_H = enc_outputs_sbe @ Wc.T
    score = jnp.tanh(weighted_s + weighted_H) @ Wa_T.T       # [S, B, 1]
    attn = jax.nn.softmax(score, axis=0)                     # softmax over seq
    enc_b = jnp.transpose(enc_outputs_sbe, (1, 0, 2))        # [B, S, E2]
    attn_b = jnp.transpose(attn, (1, 2, 0))                  # [B, 1, S]
    ctx = jnp.matmul(attn_b, enc_b)                          # [B, 1, E2]
    return jnp.transpose(ctx, (1, 0, 2))                     # [1, B, E2]


if __name__ == "__main__":
    B, S, T = 2, 8, 4
    enc_hid_dim, dec_hid_dim = 16, 32
    E2 = 2 * enc_hid_dim

    key = jax.random.PRNGKey(0)
    k1, k2, k3, k4, k5, k6, k7, k8 = jax.random.split(key, 8)

    # PyTorch-style uniform(-1/sqrt(fan_in), 1/sqrt(fan_in)) parameter init.
    Wb = jax.random.uniform(k1, (dec_hid_dim, dec_hid_dim), jnp.float32,
                            -1.0 / dec_hid_dim ** 0.5, 1.0 / dec_hid_dim ** 0.5)
    Wc = jax.random.uniform(k2, (dec_hid_dim, E2), jnp.float32,
                            -1.0 / E2 ** 0.5, 1.0 / E2 ** 0.5)
    Wa_T = jax.random.uniform(k3, (1, dec_hid_dim), jnp.float32,
                              -1.0 / dec_hid_dim ** 0.5, 1.0 / dec_hid_dim ** 0.5)
    fc_w = jax.random.uniform(k4, (dec_hid_dim, E2), jnp.float32,
                              -1.0 / E2 ** 0.5, 1.0 / E2 ** 0.5)
    fc_b = jax.random.uniform(k5, (dec_hid_dim,), jnp.float32,
                              -1.0 / E2 ** 0.5, 1.0 / E2 ** 0.5)

    # Encoder outputs kept batch-major (the layout is produced once by the
    # encoder, not re-transposed per attention call); a seq-major view is
    # built only for the PyTorch-layout reference.
    enc_bse = jax.random.normal(k6, (B, S, E2), jnp.float32)
    enc_sbe = jnp.transpose(enc_bse, (1, 0, 2))
    enc_hidden = jax.random.normal(k7, (2, B, enc_hid_dim), jnp.float32)
    dec_hiddens = jax.random.normal(k8, (T, B, dec_hid_dim), jnp.float32)

    # One-time parameter re-layout (at "load time", not per call).
    params = prepare_seq2seq_params(Wb, Wc, Wa_T, fc_w, fc_b)

    # --- exact path (f32 storage / f32 tanh): validates the math ------------
    enc_s32, w_h32, h0 = precompute_encoder_tensors(
        enc_bse, enc_hidden, params, storage_dtype=jnp.float32)
    h0 = jax.block_until_ready(h0)
    h0_ref = jnp.tanh(
        jnp.concatenate([enc_hidden[-2], enc_hidden[-1]], axis=-1) @ fc_w.T
        + fc_b)
    assert h0.shape == (B, dec_hid_dim), h0.shape
    assert jnp.allclose(h0, h0_ref, atol=1e-5, rtol=1e-5), (
        float(jnp.max(jnp.abs(h0 - h0_ref))))

    ctx32 = jax.block_until_ready(
        bahdanau_attention(dec_hiddens, enc_s32, w_h32, params,
                           tanh_dtype=jnp.float32))
    assert ctx32.shape == (T, B, E2), ctx32.shape
    refs = jnp.stack([
        reference_attention(dec_hiddens[t][None], enc_sbe, Wb, Wc, Wa_T)[0]
        for t in range(T)])
    err32 = float(jnp.max(jnp.abs(ctx32 - refs)))
    assert jnp.allclose(ctx32, refs, atol=1e-4, rtol=1e-4), err32

    # --- performance path (bf16 storage; bf16 tanh on v6e/v7x) --------------
    enc_sb, w_hb, _ = precompute_encoder_tensors(
        enc_bse, enc_hidden, params, storage_dtype=jnp.bfloat16)
    ctx = jax.block_until_ready(
        bahdanau_attention(dec_hiddens, enc_sb, w_hb, params))
    err = float(jnp.max(jnp.abs(ctx - refs)))
    assert jnp.allclose(ctx, refs, atol=5e-2, rtol=5e-2), err

    print("KERNEL_OK")
</pallas_src>

<mosaic_0001>
module attributes {stable_mosaic.version = 11 : i64} {
  func.func @_precompute_kernel(%arg0: memref<16x32xf32, #tpu.memory_space<vmem>>, %arg1: memref<32x32xf32, #tpu.memory_space<vmem>>, %arg2: memref<2x32xf32, #tpu.memory_space<vmem>>, %arg3: memref<32x32xf32, #tpu.memory_space<vmem>>, %arg4: memref<1x32xf32, #tpu.memory_space<vmem>>, %arg5: memref<16x32xf32, #tpu.memory_space<vmem>>, %arg6: memref<16x32xf32, #tpu.memory_space<vmem>>, %arg7: memref<2x32xf32, #tpu.memory_space<vmem>>) attributes {dimension_semantics = [], scalar_prefetch = 0 : i64, scratch_operands = 0 : i64, tpu.core_type = #tpu.core_type<tc>} {
    %c0 = arith.constant 0 : index
    %c0_0 = arith.constant 0 : index
    %0 = vector.load %arg0[%c0, %c0_0] : memref<16x32xf32, #tpu.memory_space<vmem>>, vector<16x32xf32>
    %c0_1 = arith.constant 0 : index
    %c0_2 = arith.constant 0 : index
    %1 = vector.load %arg1[%c0_1, %c0_2] : memref<32x32xf32, #tpu.memory_space<vmem>>, vector<32x32xf32>
    %cst = arith.constant dense<0.000000e+00> : vector<16x32xf32>
    %2 = tpu.matmul %0, %1, %cst {dimension_numbers = #tpu.dot_dimension_numbers<[1], [0], [0], [1], [0, 0, 1, 1], [], []>} : vector<16x32xf32>, vector<32x32xf32>, vector<16x32xf32> -> vector<16x32xf32>
    %c0_3 = arith.constant 0 : index
    %c0_4 = arith.constant 0 : index
    %3 = vector.load %arg5[%c0_3, %c0_4] : memref<16x32xf32, #tpu.memory_space<vmem>>, vector<16x32xf32>
    tpu.vector_store %arg5[%c0_3, %c0_4], %2 {strides = array<i32>} : memref<16x32xf32, #tpu.memory_space<vmem>>, vector<16x32xf32>,
    %c0_5 = arith.constant 0 : index
    %c0_6 = arith.constant 0 : index
    %4 = vector.load %arg6[%c0_5, %c0_6] : memref<16x32xf32, #tpu.memory_space<vmem>>, vector<16x32xf32>
    tpu.vector_store %arg6[%c0_5, %c0_6], %0 {strides = array<i32>} : memref<16x32xf32, #tpu.memory_space<vmem>>, vector<16x32xf32>,
    %c0_7 = arith.constant 0 : index
    %c0_8 = arith.constant 0 : index
    %5 = vector.load %arg2[%c0_7, %c0_8] : memref<2x32xf32, #tpu.memory_space<vmem>>, vector<2x32xf32>
    %c0_9 = arith.constant 0 : index
    %c0_10 = arith.constant 0 : index
    %6 = vector.load %arg3[%c0_9, %c0_10] : memref<32x32xf32, #tpu.memory_space<vmem>>, vector<32x32xf32>
    %cst_11 = arith.constant dense<0.000000e+00> : vector<2x32xf32>
    %7 = tpu.matmul %5, %6, %cst_11 {dimension_numbers = #tpu.dot_dimension_numbers<[1], [0], [0], [1], [0, 0, 1, 1], [], []>} : vector<2x32xf32>, vector<32x32xf32>, vector<2x32xf32> -> vector<2x32xf32>
    %c0_12 = arith.constant 0 : index
    %c0_13 = arith.constant 0 : index
    %8 = vector.load %arg4[%c0_12, %c0_13] : memref<1x32xf32, #tpu.memory_space<vmem>>, vector<1x32xf32>
    %9 = vector.broadcast %8 : vector<1x32xf32> to vector<2x32xf32>
    %10 = arith.addf %7, %9 : vector<2x32xf32>
    %11 = math.tanh %10 : vector<2x32xf32>
    %c0_14 = arith.constant 0 : index
    %c0_15 = arith.constant 0 : index
    %12 = vector.load %arg7[%c0_14, %c0_15] : memref<2x32xf32, #tpu.memory_space<vmem>>, vector<2x32xf32>
    tpu.vector_store %arg7[%c0_14, %c0_15], %11 {strides = array<i32>} : memref<2x32xf32, #tpu.memory_space<vmem>>, vector<2x32xf32>,
    return
  }
}

</mosaic_0001>

<llo_original>
// kernel: tpu_custom_call.1
$region0: #{tpu_custom_call.1}
  #allocation0 [shape = 'u32[]', space=smem, size = 0x4, offset = 0x4, fixed_abs, tag = 'smem constant byte address 0x4 - core index']
  #allocation1 [shape = 'u32[144,128]{1,0:T(1,128)}', space=vmem, size = 0x12000, scoped, tag = 'internal scratch']
  %s0 = inlined_call_operand.hbm [shape: f32[16,32], index: 0, kind: input, shape index: {}]
  %s1 = inlined_call_operand.hbm [shape: f32[32,32], index: 1, kind: input, shape index: {}]
  %s2 = inlined_call_operand.vmem [shape: f32[2,32], index: 2, kind: input, shape index: {}]
  %s3 = inlined_call_operand.hbm [shape: f32[32,32], index: 3, kind: input, shape index: {}]
  %s4 = inlined_call_operand.vmem [shape: f32[1,32], index: 4, kind: input, shape index: {}]
  %s5 = inlined_call_operand.hbm [shape: f32[16,32], index: 5, kind: output, shape index: {0}]
  %s6 = inlined_call_operand.hbm [shape: f32[16,32], index: 6, kind: output, shape index: {1}]
  %s7 = inlined_call_operand.hbm [shape: f32[2,32], index: 7, kind: output, shape index: {2}]
  %8 = xla_tuple %s5, %s6, %s7
  %s9 = sld [smem:[#allocation0]]
  $region58: #{tpu_custom_call.1} parent=0
    _
  %s11 = ssub.s32 1, %s9
  %s12 = scalar_select 0, %s11, %s9
  $region1: #{tpu_custom_call.1} parent=0
    #allocation2 [shape = 'u8[8192]{0}', space=vmem, size = 0x2000, scoped, tag = 'input window, operand 0, single buffered']
    #allocation3 [shape = 's32[1]{0}', space=sflag, size = 0x4, scoped, tag = 'scoped memory for tpu_custom_call.1']
    #allocation4 [shape = 's32[1]{0}', space=sflag, size = 0x4, scoped, tag = 'scoped memory for tpu_custom_call.1']
    #allocation5 [shape = 'u8[16384]{0}', space=vmem, size = 0x4000, scoped, tag = 'input window, operand 1, single buffered']
    #allocation6 [shape = 's32[1]{0}', space=sflag, size = 0x4, scoped, tag = 'scoped memory for tpu_custom_call.1']
    #allocation7 [shape = 'u8[16384]{0}', space=vmem, size = 0x4000, scoped, tag = 'input window, operand 3, single buffered']
    #allocation8 [shape = 'u8[8192]{0}', space=vmem, size = 0x2000, scoped, tag = 'output window, operand 0, single buffered']
    #allocation9 [shape = 'u8[8192]{0}', space=vmem, size = 0x2000, scoped, tag = 'output window, operand 1, single buffered']
    #allocation10 [shape = 's32[1]{0}', space=sflag, size = 0x4, scoped, tag = 'scoped memory for tpu_custom_call.1']
    #allocation11 [shape = 'u8[1024]{0}', space=vmem, size = 0x400, scoped, tag = 'output window, operand 2, single buffered']
    %13 = vsyncpa [#allocation3], 0
    %14 = vsyncpa [#allocation6], 0
    %15 = vsyncpa [#allocation4], 0
    %16 = vsyncpa [#allocation10], 0
    // Predicated region
    $region2: #{tpu_custom_call.1} parent=1 // pred_check
      _
    $region3: #{tpu_custom_call.1} parent=1 // pred_check_branch
      %18 = sbr.rel (0) target = $region5
    $region4: #{tpu_custom_call.1} parent=1 // pred_region
      %s20 = ssub.s32 256, 256
      %21 = vsyncadd [#allocation3], %s20
      %s22 = sshll.u32 [#allocation2], 4
      %s23 = int_to_ptr.vmem [resolvable:$true] %s22
      %28 = dma.hbm_to_vmem [thread:$0]  %s0, 256, %s23, [#allocation3], 128, 128, 8
    $region5: #{tpu_custom_call.1} parent=1 // pred_fallthru
      _
    // Predicated region
    $region6: #{tpu_custom_call.1} parent=1 // pred_check
      _
    $region7: #{tpu_custom_call.1} parent=1 // pred_check_branch
      %30 = sbr.rel (0) target = $region9
    $region8: #{tpu_custom_call.1} parent=1 // pred_region
      %s32 = ssub.s32 512, 512
      %33 = vsyncadd [#allocation6], %s32
      %s34 = sshll.u32 [#allocation5], 4
      %s35 = int_to_ptr.vmem [resolvable:$true] %s34
      %40 = dma.hbm_to_vmem [thread:$0]  %s1, 512, %s35, [#allocation6], 128, 128, 8
    $region9: #{tpu_custom_call.1} parent=1 // pred_fallthru
      _
    // Predicated region
    $region10: #{tpu_custom_call.1} parent=1 // pred_check
      _
    $region11: #{tpu_custom_call.1} parent=1 // pred_check_branch
      %42 = sbr.rel (0) target = $region13
    $region12: #{tpu_custom_call.1} parent=1 // pred_region
      _
    $region13: #{tpu_custom_call.1} parent=1 // pred_fallthru
      _
    // Predicated region
    $region14: #{tpu_custom_call.1} parent=1 // pred_check
      _
    $region15: #{tpu_custom_call.1} parent=1 // pred_check_branch
      %44 = sbr.rel (0) target = $region17
    $region16: #{tpu_custom_call.1} parent=1 // pred_region
      %s46 = ssub.s32 512, 512
      %47 = vsyncadd [#allocation6], %s46
      %s48 = sshll.u32 [#allocation7], 4
      %s49 = int_to_ptr.vmem [resolvable:$true] %s48
      %54 = dma.hbm_to_vmem [thread:$0]  %s3, 512, %s49, [#allocation6], 128, 128, 8
    $region17: #{tpu_custom_call.1} parent=1 // pred_fallthru
      _
    // Predicated region
    $region18: #{tpu_custom_call.1} parent=1 // pred_check
      _
    $region19: #{tpu_custom_call.1} parent=1 // pred_check_branch
      %56 = sbr.rel (0) target = $region21
    $region20: #{tpu_custom_call.1} parent=1 // pred_region
      _
    $region21: #{tpu_custom_call.1} parent=1 // pred_fallthru
      _
    // Predicated region
    $region22: #{tpu_custom_call.1} parent=1 // pred_check
      _
    $region23: #{tpu_custom_call.1} parent=1 // pred_check_branch
      %58 = sbr.rel (0) target = $region25
    $region24: #{tpu_custom_call.1} parent=1 // pred_region
      %59 = dma.done [#allocation3], 256
    $region25: #{tpu_custom_call.1} parent=1 // pred_fallthru
      _
    // Predicated region
    $region26: #{tpu_custom_call.1} parent=1 // pred_check
      _
    $region27: #{tpu_custom_call.1} parent=1 // pred_check_branch
      %61 = sbr.rel (0) target = $region29
    $region28: #{tpu_custom_call.1} parent=1 // pred_region
      %62 = dma.done [#allocation6], 512
    $region29: #{tpu_custom_call.1} parent=1 // pred_fallthru
      _
    // Predicated region
    $region30: #{tpu_custom_call.1} parent=1 // pred_check
      _
    $region31: #{tpu_custom_call.1} parent=1 // pred_check_branch
      %64 = sbr.rel (0) target = $region33
    $region32: #{tpu_custom_call.1} parent=1 // pred_region
      %65 = dma.done [#allocation6], 512
    $region33: #{tpu_custom_call.1} parent=1 // pred_fallthru
      _
    %v66 = vld [vmem:[#allocation2] sm:$0xff]
    %v67 = vld [vmem:[#allocation2 + $0x8] sm:$0xff]
    %v68 = vld [vmem:[#allocation5] sm:$0xff]
    %v69 = vld [vmem:[#allocation5 + $0x8] sm:$0xff]
    %v70 = vld [vmem:[#allocation5 + $0x10] sm:$0xff]
    %v71 = vld [vmem:[#allocation5 + $0x18] sm:$0xff]
    %vm72 = vcmask 261120
    %v74 = vsel %vm72, %v66, 0
    %v77 = vsel %vm72, %v67, 0
    %79 = vmatprep.subr.mxu0 0.0
    %80 = vmatpush1.msra.mxu0 %v68
    %81 = vmatprep.subr.mxu0 0.0
    %82 = vmatpush1.msra.mxu0 %v69
    %83 = vmatprep.subr.mxu0 0.0
    %84 = vmatpush1.msra.mxu0 %v70
    %85 = vmatprep.subr.mxu0 0.0
    %86 = vmatpush1.msra.mxu0 %v71
    %87 = vmatprep.subr.mxu0 0.0
    %88 = vmatpush1.msra.mxu0 0.0
    %89 = vmatprep.subr.mxu0 0.0
    %90 = vmatpush1.msra.mxu0 0.0
    %91 = vmatprep.subr.mxu0 0.0
    %92 = vmatpush1.msra.mxu0 0.0
    %93 = vmatprep.subr.mxu0 0.0
    %94 = vmatpush1.msra.mxu0 0.0
    %95 = vmatprep.subr.mxu0 0.0
    %96 = vmatpush1.msra.mxu0 0.0
    %97 = vmatprep.subr.mxu0 0.0
    %98 = vmatpush1.msra.mxu0 0.0
    %99 = vmatprep.subr.mxu0 0.0
    %100 = vmatpush1.msra.mxu0 0.0
    %101 = vmatprep.subr.mxu0 0.0
    %102 = vmatpush1.msra.mxu0 0.0
    %103 = vmatprep.subr.mxu0 0.0
    %104 = vmatpush1.msra.mxu0 0.0
    %105 = vmatprep.subr.mxu0 0.0
    %106 = vmatpush1.msra.mxu0 0.0
    %107 = vmatprep.subr.mxu0 0.0
    %108 = vmatpush1.msra.mxu0 0.0
    %109 = vmatprep.subr.mxu0 0.0
    %110 = vmatpush1.msra.mxu0 0.0
    %111 = vmatprep.subr.mxu0 0.0
    %112 = vmatpush1.msra.mxu0 0.0
    %113 = vmatprep.subr.mxu0 0.0
    %114 = vmatpush1.msra.mxu0 0.0
    %115 = vmatprep.subr.mxu0 0.0
    %116 = vmatpush1.msra.mxu0 0.0
    %117 = vmatprep.subr.mxu0 0.0
    %118 = vmatpush1.msra.mxu0 0.0
    %119 = vmatprep.subr.mxu0 0.0
    %120 = vmatpush1.msra.mxu0 0.0
    %121 = vmatprep.subr.mxu0 0.0
    %122 = vmatpush1.msra.mxu0 0.0
    %123 = vmatprep.subr.mxu0 0.0
    %124 = vmatpush1.msra.mxu0 0.0
    %125 = vmatprep.subr.mxu0 0.0
    %126 = vmatpush1.msra.mxu0 0.0
    %127 = vmatprep.subr.mxu0 0.0
    %128 = vmatpush1.msra.mxu0 0.0
    %129 = vmatprep.subr.mxu0 0.0
    %130 = vmatpush1.msra.mxu0 0.0
    %131 = vmatprep.subr.mxu0 0.0
    %132 = vmatpush1.msra.mxu0 0.0
    %133 = vmatprep.subr.mxu0 0.0
    %134 = vmatpush1.msra.mxu0 0.0
    %135 = vmatprep.subr.mxu0 0.0
    %136 = vmatpush1.msra.mxu0 0.0
    %137 = vmatprep.subr.mxu0 0.0
    %138 = vmatpush1.msra.mxu0 0.0
    %139 = vmatprep.subr.mxu0 0.0
    %140 = vmatpush1.msra.mxu0 0.0
    %141 = vmatprep.subr.mxu0 0.0
    %142 = vmatpush1.msra.mxu0 0.0
    %143 = vmatprep.mubr.f32.mxu0 0.0
    %144 = vmatmul.mubr.f32.gmra.mrb[0].mxu0 %v74
    %v145 = vpop.f32.mrb[0].mxu0
    %v146 = vadd.f32 0.0, %v145
    %v147 = vpop.f32.mrb[0].mxu0
    %148 = vmatprep.mubr.f32.mxu0 0.0
    %149 = vmatmul.mubr.f32.gmra.mrb[0].mxu0 %v77
    %v150 = vpop.f32.mrb[0].mxu0
    %v151 = vadd.f32 0.0, %v150
    %v152 = vpop.f32.mrb[0].mxu0
    %153 = vdwg.mxu0
    %154 = vst.msk [vmem:[#allocation8] sm:$0xff] %vm72, %v146
    %155 = vst.msk [vmem:[#allocation8 + $0x8] sm:$0xff] %vm72, %v151
    %156 = vst.msk [vmem:[#allocation9] sm:$0xff] %vm72, %v66
    %157 = vst.msk [vmem:[#allocation9 + $0x8] sm:$0xff] %vm72, %v67
    %v158 = vld [vmem:[%s2] sm:$0x3]
    %v159 = vld [vmem:[#allocation7] sm:$0xff]
    %v160 = vld [vmem:[#allocation7 + $0x8] sm:$0xff]
    %v161 = vld [vmem:[#allocation7 + $0x10] sm:$0xff]
    %v162 = vld [vmem:[#allocation7 + $0x18] sm:$0xff]
    %v163 = vld [vmem:[%s4] sm:$0x1]
    %v165 = vlaneseq
    %v166 = vshrl.u32 %v165, 7
    %v167 = vsub.s32 0, %v166
    %v168 = vrot.slane %v163, %v167
    %v171 = vsel %vm72, %v158, 0
    %173 = vmatprep.subr.mxu0 0.0
    %174 = vmatpush1.msra.mxu0 %v159
    %175 = vmatprep.subr.mxu0 0.0
    %176 = vmatpush1.msra.mxu0 %v160
    %177 = vmatprep.subr.mxu0 0.0
    %178 = vmatpush1.msra.mxu0 %v161
    %179 = vmatprep.subr.mxu0 0.0
    %180 = vmatpush1.msra.mxu0 %v162
    %181 = vmatprep.subr.mxu0 0.0
    %182 = vmatpush1.msra.mxu0 0.0
    %183 = vmatprep.subr.mxu0 0.0
    %184 = vmatpush1.msra.mxu0 0.0
    %185 = vmatprep.subr.mxu0 0.0
    %186 = vmatpush1.msra.mxu0 0.0
    %187 = vmatprep.subr.mxu0 0.0
    %188 = vmatpush1.msra.mxu0 0.0
    %189 = vmatprep.subr.mxu0 0.0
    %190 = vmatpush1.msra.mxu0 0.0
    %191 = vmatprep.subr.mxu0 0.0
    %192 = vmatpush1.msra.mxu0 0.0
    %193 = vmatprep.subr.mxu0 0.0
    %194 = vmatpush1.msra.mxu0 0.0
    %195 = vmatprep.subr.mxu0 0.0
    %196 = vmatpush1.msra.mxu0 0.0
    %197 = vmatprep.subr.mxu0 0.0
    %198 = vmatpush1.msra.mxu0 0.0
    %199 = vmatprep.subr.mxu0 0.0
    %200 = vmatpush1.msra.mxu0 0.0
    %201 = vmatprep.subr.mxu0 0.0
    %202 = vmatpush1.msra.mxu0 0.0
    %203 = vmatprep.subr.mxu0 0.0
    %204 = vmatpush1.msra.mxu0 0.0
    %205 = vmatprep.subr.mxu0 0.0
    %206 = vmatpush1.msra.mxu0 0.0
    %207 = vmatprep.subr.mxu0 0.0
    %208 = vmatpush1.msra.mxu0 0.0
    %209 = vmatprep.subr.mxu0 0.0
    %210 = vmatpush1.msra.mxu0 0.0
    %211 = vmatprep.subr.mxu0 0.0
    %212 = vmatpush1.msra.mxu0 0.0
    %213 = vmatprep.subr.mxu0 0.0
    %214 = vmatpush1.msra.mxu0 0.0
    %215 = vmatprep.subr.mxu0 0.0
    %216 = vmatpush1.msra.mxu0 0.0
    %217 = vmatprep.subr.mxu0 0.0
    %218 = vmatpush1.msra.mxu0 0.0
    %219 = vmatprep.subr.mxu0 0.0
    %220 = vmatpush1.msra.mxu0 0.0
    %221 = vmatprep.subr.mxu0 0.0
    %222 = vmatpush1.msra.mxu0 0.0
    %223 = vmatprep.subr.mxu0 0.0
    %224 = vmatpush1.msra.mxu0 0.0
    %225 = vmatprep.subr.mxu0 0.0
    %226 = vmatpush1.msra.mxu0 0.0
    %227 = vmatprep.subr.mxu0 0.0
    %228 = vmatpush1.msra.mxu0 0.0
    %229 = vmatprep.subr.mxu0 0.0
    %230 = vmatpush1.msra.mxu0 0.0
    %231 = vmatprep.subr.mxu0 0.0
    %232 = vmatpush1.msra.mxu0 0.0
    %233 = vmatprep.subr.mxu0 0.0
    %234 = vmatpush1.msra.mxu0 0.0
    %235 = vmatprep.subr.mxu0 0.0
    %236 = vmatpush1.msra.mxu0 0.0
    %237 = vmatprep.mubr.f32.mxu0 0.0
    %238 = vmatmul.mubr.f32.gmra.mrb[0].mxu0 %v171
    %v239 = vpop.f32.mrb[0].mxu0
    %v240 = vadd.f32 %v168, %v239
    %v241 = vpop.f32.mrb[0].mxu0
    %242 = vdwg.mxu0
    %v243 = vtanh.pop %v240
    %vm244 = vcmask 254976
    %245 = vst.msk [vmem:[#allocation11] sm:$0x3] %vm244, %v243
    // Predicated region
    $region34: #{tpu_custom_call.1} parent=1 // pred_check
      _
    $region35: #{tpu_custom_call.1} parent=1 // pred_check_branch
      %247 = sbr.rel (0) target = $region37
    $region36: #{tpu_custom_call.1} parent=1 // pred_region
      %s249 = ssub.s32 256, 256
      %250 = vsyncadd [#allocation4], %s249
      %s251 = sshll.u32 [#allocation8], 4
      %s252 = int_to_ptr.vmem [resolvable:$true] %s251
      %257 = dma.vmem_to_hbm [thread:$0]  %s252, 256, %s5, [#allocation4], 128, 128, 8
    $region37: #{tpu_custom_call.1} parent=1 // pred_fallthru
      _
    // Predicated region
    $region38: #{tpu_custom_call.1} parent=1 // pred_check
      _
    $region39: #{tpu_custom_call.1} parent=1 // pred_check_branch
      %259 = sbr.rel (0) target = $region41
    $region40: #{tpu_custom_call.1} parent=1 // pred_region
      %s261 = ssub.s32 256, 256
      %262 = vsyncadd [#allocation10], %s261
      %s263 = sshll.u32 [#allocation9], 4
      %s264 = int_to_ptr.vmem [resolvable:$true] %s263
      %269 = dma.vmem_to_hbm [thread:$0]  %s264, 256, %s6, [#allocation10], 128, 128, 8
    $region41: #{tpu_custom_call.1} parent=1 // pred_fallthru
      _
    // Predicated region
    $region42: #{tpu_custom_call.1} parent=1 // pred_check
      _
    $region43: #{tpu_custom_call.1} parent=1 // pred_check_branch
      %271 = sbr.rel (0) target = $region45
    $region44: #{tpu_custom_call.1} parent=1 // pred_region
      %s273 = ssub.s32 32, 32
      %274 = vsyncadd [#allocation10], %s273
      %s276 = sshll.u32 [#allocation11], 4
      %s277 = int_to_ptr.vmem [resolvable:$true] %s276
      %279 = dma.vmem_to_hbm [thread:$0]  %s277, 32, %s7, [#allocation10]
    $region45: #{tpu_custom_call.1} parent=1 // pred_fallthru
      _
    // Predicated region
    $region46: #{tpu_custom_call.1} parent=1 // pred_check
      _
    $region47: #{tpu_custom_call.1} parent=1 // pred_check_branch
      %281 = sbr.rel (0) target = $region49
    $region48: #{tpu_custom_call.1} parent=1 // pred_region
      %282 = dma.done [#allocation4], 256
    $region49: #{tpu_custom_call.1} parent=1 // pred_fallthru
      _
    // Predicated region
    $region50: #{tpu_custom_call.1} parent=1 // pred_check
      _
    $region51: #{tpu_custom_call.1} parent=1 // pred_check_branch
      %284 = sbr.rel (0) target = $region53
    $region52: #{tpu_custom_call.1} parent=1 // pred_region
      %285 = dma.done [#allocation10], 256
    $region53: #{tpu_custom_call.1} parent=1 // pred_fallthru
      _
    // Predicated region
    $region54: #{tpu_custom_call.1} parent=1 // pred_check
      _
    $region55: #{tpu_custom_call.1} parent=1 // pred_check_branch
      %287 = sbr.rel (0) target = $region57
    $region56: #{tpu_custom_call.1} parent=1 // pred_region
      %288 = dma.done [#allocation10], 32
    $region57: #{tpu_custom_call.1} parent=1 // pred_fallthru
      _
    %289 = vsyncpa [#allocation3], 1
    %290 = vsyncpa [#allocation6], 1
    %291 = vsyncpa [#allocation4], 1
    %292 = vsyncpa [#allocation10], 1

</llo_original>
